<compile_context>
chip_gen: v7x
topology: tpu7x:2x2x1
jax: 0.10.0
libtpu: 0.0.40
codegen_flags: <defaults>
</compile_context>

<pallas_src>
import jax
import jax.numpy as jnp
from jax.experimental import pallas as pl
from jax.experimental.pallas import tpu as pltpu

LANES = 128
# (2048, 128) f32 = 1 MiB per operand per block.  With double buffering for
# input + output that is ~4 MiB of VMEM: comfortably inside the default
# scoped limits on v5e (16 MiB), v6e (32 MiB) and v7x (32 MiB of 64 physical).
MAX_BLOCK_ROWS = 2048
# Below this size a Pallas launch is pure overhead; just fuse into XLA.
PALLAS_MIN_N = 64 * 1024


def _linreg_kernel(params_ref, x_ref, o_ref):
    # Elementwise affine map on the VPU: y = x * w + b
    w = params_ref[0]
    b = params_ref[1]
    o_ref[...] = x_ref[...] * w + b


def _linreg_pallas(x, params):
    """x: f32[N], params: f32[2] = [w, b] -> f32[N]."""
    n = x.shape[0]
    rows = pl.cdiv(n, LANES)

    if rows <= MAX_BLOCK_ROWS:
        # Single block covering the whole (padded) array; pad rows to a
        # multiple of 8 so the block is sublane-dense.
        block_rows = ((rows + 7) // 8) * 8
        rows_padded = block_rows
    else:
        block_rows = MAX_BLOCK_ROWS
        rows_padded = ((rows + block_rows - 1) // block_rows) * block_rows

    n_padded = rows_padded * LANES
    x_padded = jnp.pad(x, (0, n_padded - n))
    x2d = x_padded.reshape(rows_padded, LANES)

    num_blocks = rows_padded // block_rows

    out = pl.pallas_call(
        _linreg_kernel,
        out_shape=jax.ShapeDtypeStruct((rows_padded, LANES), x.dtype),
        grid=(num_blocks,),
        in_specs=[
            pl.BlockSpec(memory_space=pltpu.SMEM),               # [w, b] scalars
            pl.BlockSpec((block_rows, LANES), lambda i: (i, 0)),  # x tile
        ],
        out_specs=pl.BlockSpec((block_rows, LANES), lambda i: (i, 0)),
        compiler_params=pltpu.CompilerParams(
            # Independent elementwise tiles: lets v7x shard the grid across
            # its 2 TensorCores; harmless (1 TC) on v5e/v6e.
            dimension_semantics=("parallel",),
        ),
    )(params, x2d)

    return out.reshape(-1)[:n]


def linear_regression_forward(x, w, b, *, force_pallas=False):
    """Forward pass of LinearRegression.

    Args:
      x: f32[N] input samples.
      w: f32[1] weight (scalar).
      b: f32[1] bias (scalar).
      force_pallas: route through the Pallas kernel even for tiny N.
    Returns:
      f32[N] predictions y_hat = x * w + b.
    """
    n = x.shape[0]
    if (n < PALLAS_MIN_N) and not force_pallas:
        # Launch overhead dwarfs the work at small N; let XLA fuse it.
        return x * w[0] + b[0]
    params = jnp.concatenate([w, b]).astype(x.dtype)
    return _linreg_pallas(x, params)


if __name__ == "__main__":
    key = jax.random.PRNGKey(0)

    # Deterministic parameter init matching the module's __init__:
    #   self.w = torch.ones(1); self.b = torch.zeros(1)
    w = jnp.ones((1,), dtype=jnp.float32)
    b = jnp.zeros((1,), dtype=jnp.float32)

    # --- Case 1: the module's actual workload size (N=100). ---
    # Force the Pallas path to exercise the kernel (single (8,128) block).
    N_small = 100
    k1, k2 = jax.random.split(key)
    x_small = jax.random.normal(k1, (N_small,), dtype=jnp.float32)
    y_small = linear_regression_forward(x_small, w, b, force_pallas=True)
    y_small = jax.block_until_ready(y_small)
    y_small_ref = x_small * w[0] + b[0]
    assert y_small.shape == (N_small,)
    assert jnp.allclose(y_small, y_small_ref, atol=1e-6), "small-N mismatch"

    # --- Case 2: larger N to exercise the multi-block pipelined grid. ---
    N_big = 300_000  # rows=2344 -> padded to 4096 rows -> grid=(2,)
    x_big = jax.random.normal(k2, (N_big,), dtype=jnp.float32)
    y_big = linear_regression_forward(x_big, w, b, force_pallas=True)
    y_big = jax.block_until_ready(y_big)
    y_big_ref = x_big * w[0] + b[0]
    assert y_big.shape == (N_big,)
    assert jnp.allclose(y_big, y_big_ref, atol=1e-6), "large-N mismatch"

    # TODO(synk): the module's `train` loop (per-sample SGD + backward) is
    # host-side training logic, not part of the forward hot path, so it is
    # not implemented as a kernel.

    print("KERNEL_OK")
</pallas_src>

<mosaic_0001>
module attributes {stable_mosaic.version = 11 : i64} {
  func.func @_linreg_kernel(%arg0: i32, %arg1: memref<2xf32, #tpu.memory_space<smem>>, %arg2: memref<8x128xf32, #tpu.memory_space<vmem>>, %arg3: memref<8x128xf32, #tpu.memory_space<vmem>>) attributes {dimension_semantics = [#tpu.dimension_semantics<parallel>], iteration_bounds = array<i64: 1>, scalar_prefetch = 0 : i64, scratch_operands = 0 : i64, tpu.core_type = #tpu.core_type<tc>, window_params = [{transform_indices = @transform_0, window_bounds = array<i64: 2>}, {transform_indices = @transform_1, window_bounds = array<i64: 8, 128>}, {transform_indices = @transform_2, window_bounds = array<i64: 8, 128>}]} {
    %c0 = arith.constant 0 : index
    %0 = memref.load %arg1[%c0] : memref<2xf32, #tpu.memory_space<smem>>
    %c1 = arith.constant 1 : index
    %1 = memref.load %arg1[%c1] : memref<2xf32, #tpu.memory_space<smem>>
    %c0_0 = arith.constant 0 : index
    %c0_1 = arith.constant 0 : index
    %2 = vector.load %arg2[%c0_0, %c0_1] : memref<8x128xf32, #tpu.memory_space<vmem>>, vector<8x128xf32>
    %3 = vector.broadcast %0 : f32 to vector<8x128xf32>
    %4 = arith.mulf %2, %3 : vector<8x128xf32>
    %5 = vector.broadcast %1 : f32 to vector<8x128xf32>
    %6 = arith.addf %4, %5 : vector<8x128xf32>
    %c0_2 = arith.constant 0 : index
    %c0_3 = arith.constant 0 : index
    %7 = vector.load %arg3[%c0_2, %c0_3] : memref<8x128xf32, #tpu.memory_space<vmem>>, vector<8x128xf32>
    tpu.vector_store %arg3[%c0_2, %c0_3], %6 {strides = array<i32>} : memref<8x128xf32, #tpu.memory_space<vmem>>, vector<8x128xf32>,
    return
  }
  func.func @transform_0(%arg0: i32) -> i32 {
    %c0_i32 = arith.constant 0 : i32
    %c0_i32_0 = arith.constant 0 : i32
    return %c0_i32 : i32
  }
  func.func @transform_1(%arg0: i32) -> (i32, i32) {
    %c0_i32 = arith.constant 0 : i32
    %c0_i32_0 = arith.constant 0 : i32
    return %arg0, %c0_i32 : i32, i32
  }
  func.func @transform_2(%arg0: i32) -> (i32, i32) {
    %c0_i32 = arith.constant 0 : i32
    %c0_i32_0 = arith.constant 0 : i32
    return %arg0, %c0_i32 : i32, i32
  }
}

</mosaic_0001>

<llo_original>
// kernel: tpu_custom_call.1
$region0: #{tpu_custom_call.1}
  #allocation0 [shape = 'u32[]', space=smem, size = 0x4, offset = 0x4, fixed_abs, tag = 'smem constant byte address 0x4 - core index']
  #allocation1 [shape = 'u32[144,128]{1,0:T(1,128)}', space=vmem, size = 0x12000, scoped, tag = 'internal scratch']
  %s0 = inlined_call_operand.hbm [shape: f32[2], index: 0, kind: input, shape index: {}]
  %s1 = inlined_call_operand.hbm [shape: f32[8,128], index: 1, kind: input, shape index: {}]
  %s2 = inlined_call_operand.hbm [shape: f32[8,128], index: 2, kind: output, shape index: {}]
  %s3 = sld [smem:[#allocation0]]
  $region26: #{tpu_custom_call.1} parent=0
    _
  %s5 = ssub.s32 1, %s3
  %s6 = scalar_select 0, %s5, %s3
  $region1: #{tpu_custom_call.1} parent=0
    #allocation2 [shape = 'u8[512]{0}', space=smem, size = 0x200, scoped, tag = 'input window, operand 0, single buffered']
    #allocation3 [shape = 's32[1]{0}', space=sflag, size = 0x4, scoped, tag = 'scoped memory for tpu_custom_call.1']
    #allocation4 [shape = 's32[1]{0}', space=sflag, size = 0x4, scoped, tag = 'scoped memory for tpu_custom_call.1']
    #allocation5 [shape = 's32[1]{0}', space=sflag, size = 0x4, scoped, tag = 'scoped memory for tpu_custom_call.1']
    #allocation6 [shape = 'u8[4096]{0}', space=vmem, size = 0x1000, scoped, tag = 'input window, operand 1, single buffered']
    #allocation7 [shape = 'u8[4096]{0}', space=vmem, size = 0x1000, scoped, tag = 'output window, operand 0, single buffered']
    %7 = vsyncpa [#allocation5], 0
    %8 = vsyncpa [#allocation3], 0
    %9 = vsyncpa [#allocation4], 0
    // Predicated region
    $region2: #{tpu_custom_call.1} parent=1 // pred_check
      _
    $region3: #{tpu_custom_call.1} parent=1 // pred_check_branch
      %11 = sbr.rel (0) target = $region5
    $region4: #{tpu_custom_call.1} parent=1 // pred_region
      %s13 = ssub.s32 16, 16
      %14 = vsyncadd [#allocation5], %s13
      %17 = dma.hbm_to_smem %s0, 16, [#allocation2], [#allocation5]
    $region5: #{tpu_custom_call.1} parent=1 // pred_fallthru
      _
    // Predicated region
    $region6: #{tpu_custom_call.1} parent=1 // pred_check
      _
    $region7: #{tpu_custom_call.1} parent=1 // pred_check_branch
      %19 = sbr.rel (0) target = $region9
    $region8: #{tpu_custom_call.1} parent=1 // pred_region
      %s21 = ssub.s32 128, 128
      %22 = vsyncadd [#allocation3], %s21
      %s24 = sshll.u32 [#allocation6], 4
      %s25 = int_to_ptr.vmem [resolvable:$true] %s24
      %27 = dma.hbm_to_vmem [thread:$0]  %s1, 128, %s25, [#allocation3]
    $region9: #{tpu_custom_call.1} parent=1 // pred_fallthru
      _
    // Predicated region
    $region10: #{tpu_custom_call.1} parent=1 // pred_check
      _
    $region11: #{tpu_custom_call.1} parent=1 // pred_check_branch
      %29 = sbr.rel (0) target = $region13
    $region12: #{tpu_custom_call.1} parent=1 // pred_region
      %30 = dma.done [#allocation5], 16
    $region13: #{tpu_custom_call.1} parent=1 // pred_fallthru
      _
    // Predicated region
    $region14: #{tpu_custom_call.1} parent=1 // pred_check
      _
    $region15: #{tpu_custom_call.1} parent=1 // pred_check_branch
      %32 = sbr.rel (0) target = $region17
    $region16: #{tpu_custom_call.1} parent=1 // pred_region
      %33 = dma.done [#allocation3], 128
    $region17: #{tpu_custom_call.1} parent=1 // pred_fallthru
      _
    %34 = sfence
    %s35 = sld [smem:[#allocation2]]
    %s36 = sld [smem:[#allocation2 + $0x1]]
    %v37 = vld [vmem:[#allocation6] sm:$0xff]
    %v38 = vstv %s35
    %v39 = vmul.f32 %v37, %v38
    %v40 = vstv %s36
    %v41 = vadd.f32 %v39, %v40
    %42 = vst [vmem:[#allocation7] sm:$0xff] %v41
    // Predicated region
    $region18: #{tpu_custom_call.1} parent=1 // pred_check
      _
    $region19: #{tpu_custom_call.1} parent=1 // pred_check_branch
      %44 = sbr.rel (0) target = $region21
    $region20: #{tpu_custom_call.1} parent=1 // pred_region
      %s46 = ssub.s32 128, 128
      %47 = vsyncadd [#allocation4], %s46
      %s49 = sshll.u32 [#allocation7], 4
      %s50 = int_to_ptr.vmem [resolvable:$true] %s49
      %52 = dma.vmem_to_hbm [thread:$0]  %s50, 128, %s2, [#allocation4]
    $region21: #{tpu_custom_call.1} parent=1 // pred_fallthru
      _
    // Predicated region
    $region22: #{tpu_custom_call.1} parent=1 // pred_check
      _
    $region23: #{tpu_custom_call.1} parent=1 // pred_check_branch
      %54 = sbr.rel (0) target = $region25
    $region24: #{tpu_custom_call.1} parent=1 // pred_region
      %55 = dma.done [#allocation4], 128
    $region25: #{tpu_custom_call.1} parent=1 // pred_fallthru
      _
    %56 = vsyncpa [#allocation3], 1
    %57 = vsyncpa [#allocation4], 1
    %58 = vsyncpa [#allocation5], 1

</llo_original>
